<compile_context>
chip_gen: v7x
topology: tpu7x:2x2x1
jax: 0.10.0
libtpu: 0.0.40
codegen_flags: <defaults>
</compile_context>

<pallas_src>
import functools

import jax
import jax.numpy as jnp
import numpy as np
from jax.experimental import pallas as pl
from jax.experimental.pallas import tpu as pltpu


_VMEM = pl.BlockSpec(memory_space=pltpu.MemorySpace.VMEM)


def _softmax_rows(scores):
    """Numerically stable softmax over the last (lane) axis of a (B, L) block."""
    m = jnp.max(scores, axis=-1, keepdims=True)
    e = jnp.exp(scores - m)
    denom = jnp.sum(e, axis=-1, keepdims=True)
    return e * pl.reciprocal(denom, approx=True)


def _attn_dot_kernel(h_ref, enc_ref, out_ref):
    """dot: score[b,l] = sum_h hidden[b,h] * enc[b,l,h] (VPU mult + lane reduce)."""
    h = h_ref[0]                                            # (B, H)
    enc = enc_ref[...]                                      # (B, L, H)
    scores = jnp.sum(h[:, None, :] * enc, axis=-1)          # (B, L), no MXU
    out_ref[...] = _softmax_rows(scores)                    # single (B, L) store


def _attn_general_kernel(h_ref, enc_ref, w_ref, out_ref):
    """general (reformulated): g = h @ W (one matmul); score[b,l] = g[b].enc[b,l].
    The dropped bias contributes a per-row constant only -> softmax-unchanged."""
    g = jnp.dot(h_ref[0], w_ref[...],
                preferred_element_type=jnp.float32)         # (B, H), one MXU push
    enc = enc_ref[...]                                      # (B, L, H)
    scores = jnp.sum(g[:, None, :] * enc, axis=-1)          # (B, L), VPU + XLU
    out_ref[...] = _softmax_rows(scores)


def _attn_concat_kernel(h_ref, enc_ref, wh_ref, we_ref, b_ref, v_ref, out_ref):
    """concat: energy = tanh(cat([hidden, enc]) @ W.T + bias) as a split pair of
    fully batched matmuls; score = v . energy via VPU + lane reduce."""
    B, L, H = enc_ref.shape
    # hidden projection (+ bias folded in): ONE (B,H)@(H,H) matmul.
    h_proj = jnp.dot(h_ref[0], wh_ref[...],
                     preferred_element_type=jnp.float32) + b_ref[...]       # (B, H)
    # encoder projection: ONE (B*L,H)@(H,H) matmul (tile-aligned reshape).
    e_proj = jnp.dot(enc_ref[...].reshape(B * L, H), we_ref[...],
                     preferred_element_type=jnp.float32)                    # (B*L, H)
    energy = jnp.tanh(e_proj.reshape(B, L, H) + h_proj[:, None, :])         # (B, L, H)
    scores = jnp.sum(v_ref[...][None, :, :] * energy, axis=-1)              # (B, L)
    out_ref[...] = _softmax_rows(scores)


def prepare_attn_params(method, hidden_size, params):
    """One-time ("module init") weight prep, so the per-call path has no
    wrapper-side XLA ops on the parameters."""
    H = hidden_size
    if method == "dot":
        return {}
    if method == "general":
        # Reformulated score uses the torch weight as-is: g = h @ W.
        # Bias dropped in-kernel (softmax-invariant).
        return {"w": jnp.asarray(params["w_general"])}
    if method == "concat":
        W = jnp.asarray(params["w_concat"])                 # (H, 2H) torch layout
        return {
            "wh": W[:, :H].T,                               # applied to hidden
            "we": W[:, H:].T,                               # applied to enc
            "bias": jnp.asarray(params["b_concat"])[None, :],
            "v": jnp.asarray(params["v"])[None, :],
        }
    raise ValueError(method, "is not an appropriate attention method.")


@functools.partial(jax.jit, static_argnums=(0,))
def attn_forward(method, hidden, encoder_outputs, prepared):
    """Pallas implementation of Attn.forward.

    hidden:          (1, B, H) float32
    encoder_outputs: (L, B, H) float32
    returns:         (B, 1, L) float32 attention weights
    """
    L, B, H = encoder_outputs.shape
    out_shape = jax.ShapeDtypeStruct((B, L), jnp.float32)

    # Single remaining wrapper op: put H on the lane axis / batch on rows.
    # TODO(synk): removable if the caller supplies encoder_outputs as (B,L,H).
    enc_blh = jnp.transpose(encoder_outputs, (1, 0, 2))     # (B, L, H)

    if method == "dot":
        out = pl.pallas_call(
            _attn_dot_kernel, out_shape=out_shape,
            in_specs=[_VMEM, _VMEM], out_specs=_VMEM,
        )(hidden, enc_blh)
    elif method == "general":
        out = pl.pallas_call(
            _attn_general_kernel, out_shape=out_shape,
            in_specs=[_VMEM] * 3, out_specs=_VMEM,
        )(hidden, enc_blh, prepared["w"])
    elif method == "concat":
        out = pl.pallas_call(
            _attn_concat_kernel, out_shape=out_shape,
            in_specs=[_VMEM] * 6, out_specs=_VMEM,
        )(hidden, enc_blh, prepared["wh"], prepared["we"],
          prepared["bias"], prepared["v"])
    else:
        raise ValueError(method, "is not an appropriate attention method.")

    return out[:, None, :]                                  # (B, 1, L) == unsqueeze(1)


def _attn_reference_np(method, hidden, encoder_outputs, params):
    """float64 numpy reference mirroring the torch module (bias included for
    'general'; the kernel drops it, which is softmax-invariant)."""
    hid = np.asarray(hidden, np.float64)                    # (1, B, H)
    enc = np.asarray(encoder_outputs, np.float64)           # (L, B, H)
    if method == "dot":
        energies = np.sum(hid * enc, axis=2)                               # (L, B)
    elif method == "general":
        W = np.asarray(params["w_general"], np.float64)
        bias = np.asarray(params["b_general"], np.float64)
        energy = enc @ W.T + bias
        energies = np.sum(hid * energy, axis=2)
    else:
        W = np.asarray(params["w_concat"], np.float64)
        bias = np.asarray(params["b_concat"], np.float64)
        v = np.asarray(params["v"], np.float64)
        hid_exp = np.broadcast_to(hid, enc.shape)
        cat = np.concatenate([hid_exp, enc], axis=2)                       # (L, B, 2H)
        energy = np.tanh(cat @ W.T + bias)
        energies = np.sum(v * energy, axis=2)
    e_t = energies.T                                                       # (B, L)
    e_t = e_t - e_t.max(axis=1, keepdims=True)
    p = np.exp(e_t)
    p = p / p.sum(axis=1, keepdims=True)
    return p[:, None, :]                                                   # (B, 1, L)


if __name__ == "__main__":
    key = jax.random.PRNGKey(0)
    kh, ke, kw1, kb1, kw2, kb2, kv = jax.random.split(key, 7)

    B, L, H = 4, 16, 128          # small shapes; H sits on the 128-lane axis
    f32 = jnp.float32

    hidden = (0.3 * jax.random.normal(kh, (1, B, H))).astype(f32)
    encoder_outputs = (0.3 * jax.random.normal(ke, (L, B, H))).astype(f32)

    s1 = 1.0 / np.sqrt(H)
    s2 = 1.0 / np.sqrt(2 * H)
    # TODO(synk): torch's self.v is an uninitialized FloatTensor Parameter; we
    # use a deterministic random init instead.
    params = {
        "w_general": (s1 * jax.random.normal(kw1, (H, H))).astype(f32),
        "b_general": (s1 * jax.random.normal(kb1, (H,))).astype(f32),
        "w_concat": (s2 * jax.random.normal(kw2, (H, 2 * H))).astype(f32),
        "b_concat": (s2 * jax.random.normal(kb2, (H,))).astype(f32),
        "v": (0.3 * jax.random.normal(kv, (H,))).astype(f32),
    }

    for method in ("dot", "general", "concat"):
        prepared = prepare_attn_params(method, H, params)   # one-time "init"
        out = attn_forward(method, hidden, encoder_outputs, prepared)
        out = jax.block_until_ready(out)
        assert out.shape == (B, 1, L) and out.dtype == jnp.float32, method
        out_np = np.asarray(out)
        ref = _attn_reference_np(method, hidden, encoder_outputs, params)
        assert np.allclose(out_np.sum(axis=-1), 1.0, atol=5e-3), method
        assert np.allclose(out_np, ref, atol=5e-3, rtol=0.0), (
            method, float(np.max(np.abs(out_np - ref))))

    print("KERNEL_OK")
</pallas_src>

<mosaic_0001>
module attributes {stable_mosaic.version = 11 : i64} {
  func.func @_attn_dot_kernel(%arg0: memref<1x4x128xf32, #tpu.memory_space<vmem>>, %arg1: memref<4x16x128xf32, #tpu.memory_space<vmem>>, %arg2: memref<4x16xf32, #tpu.memory_space<vmem>>) attributes {dimension_semantics = [], scalar_prefetch = 0 : i64, scratch_operands = 0 : i64, tpu.core_type = #tpu.core_type<tc>} {
    %c0 = arith.constant 0 : index
    %c0_0 = arith.constant 0 : index
    %c0_1 = arith.constant 0 : index
    %0 = vector.load %arg0[%c0, %c0_0, %c0_1] : memref<1x4x128xf32, #tpu.memory_space<vmem>>, vector<1x4x128xf32>
    %1 = vector.shape_cast %0 : vector<1x4x128xf32> to vector<4x128xf32>
    %c0_2 = arith.constant 0 : index
    %c0_3 = arith.constant 0 : index
    %c0_4 = arith.constant 0 : index
    %2 = vector.load %arg1[%c0_2, %c0_3, %c0_4] : memref<4x16x128xf32, #tpu.memory_space<vmem>>, vector<4x16x128xf32>
    %3 = vector.shape_cast %1 : vector<4x128xf32> to vector<4x1x128xf32>
    %4 = vector.broadcast %3 : vector<4x1x128xf32> to vector<4x16x128xf32>
    %5 = arith.mulf %4, %2 : vector<4x16x128xf32>
    %cst = arith.constant dense<0.000000e+00> : vector<4x16xf32>
    %6 = vector.multi_reduction <add>, %5, %cst [2] : vector<4x16x128xf32> to vector<4x16xf32>
    %cst_5 = arith.constant dense<0xFF800000> : vector<4xf32>
    %7 = vector.multi_reduction <maximumf>, %6, %cst_5 [1] : vector<4x16xf32> to vector<4xf32>
    %8 = vector.shape_cast %7 : vector<4xf32> to vector<4x1xf32>
    %9 = vector.broadcast %8 : vector<4x1xf32> to vector<4x16xf32>
    %10 = arith.subf %6, %9 : vector<4x16xf32>
    %11 = math.exp %10 : vector<4x16xf32>
    %cst_6 = arith.constant dense<0.000000e+00> : vector<4xf32>
    %12 = vector.multi_reduction <add>, %11, %cst_6 [1] : vector<4x16xf32> to vector<4xf32>
    %13 = vector.shape_cast %12 : vector<4xf32> to vector<4x1xf32>
    %14 = tpu.reciprocal %13 {approx = true} : vector<4x1xf32> -> vector<4x1xf32>
    %15 = vector.broadcast %14 : vector<4x1xf32> to vector<4x16xf32>
    %16 = arith.mulf %11, %15 : vector<4x16xf32>
    %c0_7 = arith.constant 0 : index
    %c0_8 = arith.constant 0 : index
    %17 = vector.load %arg2[%c0_7, %c0_8] : memref<4x16xf32, #tpu.memory_space<vmem>>, vector<4x16xf32>
    tpu.vector_store %arg2[%c0_7, %c0_8], %16 {strides = array<i32>} : memref<4x16xf32, #tpu.memory_space<vmem>>, vector<4x16xf32>,
    return
  }
}

</mosaic_0001>

<llo_original>
// kernel: attn_forward.1
$region0: #{attn_forward.1}
  #allocation0 [shape = 'u32[]', space=smem, size = 0x4, offset = 0x4, fixed_abs, tag = 'smem constant byte address 0x4 - core index']
  #allocation1 [shape = 'u32[144,128]{1,0:T(1,128)}', space=vmem, size = 0x12000, scoped, tag = 'internal scratch']
  %s0 = inlined_call_operand.vmem [shape: f32[1,4,128], index: 0, kind: input, shape index: {}]
  %s1 = inlined_call_operand.vmem [shape: f32[4,16,128], index: 1, kind: input, shape index: {}]
  %s2 = inlined_call_operand.hbm [shape: f32[4,16], index: 2, kind: output, shape index: {}]
  %s3 = sld [smem:[#allocation0]]
  $region18: #{attn_forward.1} parent=0
    _
  %s5 = ssub.s32 1, %s3
  %s6 = scalar_select 0, %s5, %s3
  $region1: #{attn_forward.1} parent=0
    #allocation2 [shape = 'u8[2048]{0}', space=vmem, size = 0x800, scoped, tag = 'output window, operand 0, single buffered']
    #allocation3 [shape = 's32[1]{0}', space=sflag, size = 0x4, scoped, tag = 'scoped memory for attn_forward.1']
    %7 = vsyncpa [#allocation3], 0
    // Predicated region
    $region2: #{attn_forward.1} parent=1 // pred_check
      _
    $region3: #{attn_forward.1} parent=1 // pred_check_branch
      %9 = sbr.rel (0) target = $region5
    $region4: #{attn_forward.1} parent=1 // pred_region
      _
    $region5: #{attn_forward.1} parent=1 // pred_fallthru
      _
    // Predicated region
    $region6: #{attn_forward.1} parent=1 // pred_check
      _
    $region7: #{attn_forward.1} parent=1 // pred_check_branch
      %11 = sbr.rel (0) target = $region9
    $region8: #{attn_forward.1} parent=1 // pred_region
      _
    $region9: #{attn_forward.1} parent=1 // pred_fallthru
      _
    %v12 = vld [vmem:[%s0] sm:$0xf]
    %v13 = vld [vmem:[%s1] sm:$0xff]
    %v14 = vld [vmem:[%s1 + $0x8] sm:$0xff]
    %v15 = vld [vmem:[%s1 + $0x10] sm:$0xff]
    %v16 = vld [vmem:[%s1 + $0x18] sm:$0xff]
    %v17 = vld [vmem:[%s1 + $0x20] sm:$0xff]
    %v18 = vld [vmem:[%s1 + $0x28] sm:$0xff]
    %v19 = vld [vmem:[%s1 + $0x30] sm:$0xff]
    %v20 = vld [vmem:[%s1 + $0x38] sm:$0xff]
    %v23 = vunpack.c.l.s4 1966171168
    %v24 = vunpack.c.0.s8 %v23
    %v25 = vlaneseq
    %v26 = vshrl.u32 %v25, 7
    %v27 = vsub.s32 %v24, %v26
    %v28 = vrot.slane %v12, %v27
    %v29 = vcombine.high %v28, %v28
    %v31 = vunpack.c.l.s4 1966171168
    %v32 = vunpack.c.0.s8 %v31
    %v33 = vlaneseq
    %v34 = vshrl.u32 %v33, 7
    %v35 = vsub.s32 %v32, %v34
    %v36 = vrot.slane %v28, %v35
    %v38 = vunpack.c.l.s4 1966171168
    %v39 = vunpack.c.0.s8 %v38
    %v40 = vlaneseq
    %v41 = vshrl.u32 %v40, 7
    %v42 = vsub.s32 %v39, %v41
    %v43 = vrot.slane %v29, %v42
    %v44 = vcombine.high %v36, %v36
    %v45 = vcombine.high %v43, %v43
    %v46 = vlaneseq
    %v47 = vshrl.u32 %v46, 7
    %v48 = vsub.s32 0, %v47
    %v49 = vrot.slane %v36, %v48
    %v50 = vlaneseq
    %v51 = vshrl.u32 %v50, 7
    %v52 = vsub.s32 0, %v51
    %v53 = vrot.slane %v43, %v52
    %v54 = vlaneseq
    %v55 = vshrl.u32 %v54, 7
    %v56 = vsub.s32 0, %v55
    %v57 = vrot.slane %v44, %v56
    %v58 = vlaneseq
    %v59 = vshrl.u32 %v58, 7
    %v60 = vsub.s32 0, %v59
    %v61 = vrot.slane %v45, %v60
    %v66 = vmul.f32 %v49, %v13
    %v67 = vmul.f32 %v49, %v14
    %v68 = vmul.f32 %v53, %v15
    %v69 = vmul.f32 %v53, %v16
    %v70 = vmul.f32 %v57, %v17
    %v71 = vmul.f32 %v57, %v18
    %v72 = vmul.f32 %v61, %v19
    %v73 = vmul.f32 %v61, %v20
    %74 = vadd.xlane.f32.xlu0 %v66
    %v75 = vpop.xlane.xlu0 %74
    %76 = vadd.xlane.f32.xlu0 %v67
    %v77 = vpop.xlane.xlu0 %76
    %78 = vadd.xlane.f32.xlu0 %v68
    %v79 = vpop.xlane.xlu0 %78
    %80 = vadd.xlane.f32.xlu0 %v69
    %v81 = vpop.xlane.xlu0 %80
    %82 = vadd.xlane.f32.xlu0 %v70
    %v83 = vpop.xlane.xlu0 %82
    %84 = vadd.xlane.f32.xlu0 %v71
    %v85 = vpop.xlane.xlu0 %84
    %86 = vadd.xlane.f32.xlu0 %v72
    %v87 = vpop.xlane.xlu0 %86
    %88 = vadd.xlane.f32.xlu0 %v73
    %v89 = vpop.xlane.xlu0 %88
    %v98 = vlaneseq
    %v99 = vand.u32 %v98, 127
    %v100 = vlaneseq
    %v101 = vshrl.u32 %v100, 7
    %v102 = vsub.s32 %v99, %v101
    %v103 = vrot.slane %v75, %v102
    %v104 = vadd.s32 %v99, 4294967288
    %v105 = vlaneseq
    %v106 = vshrl.u32 %v105, 7
    %v107 = vsub.s32 %v104, %v106
    %v108 = vrot.slane %v77, %v107
    %vm109 = vcmask 130112
    %v110 = vsel %vm109, %v108, %v103
    %v111 = vlaneseq
    %v112 = vshrl.u32 %v111, 7
    %v113 = vsub.s32 %v99, %v112
    %v114 = vrot.slane %v79, %v113
    %v115 = vlaneseq
    %v116 = vshrl.u32 %v115, 7
    %v117 = vsub.s32 %v104, %v116
    %v118 = vrot.slane %v81, %v117
    %v119 = vsel %vm109, %v118, %v114
    %v120 = vlaneseq
    %v121 = vshrl.u32 %v120, 7
    %v122 = vsub.s32 %v99, %v121
    %v123 = vrot.slane %v83, %v122
    %v124 = vlaneseq
    %v125 = vshrl.u32 %v124, 7
    %v126 = vsub.s32 %v104, %v125
    %v127 = vrot.slane %v85, %v126
    %v128 = vsel %vm109, %v127, %v123
    %v129 = vlaneseq
    %v130 = vshrl.u32 %v129, 7
    %v131 = vsub.s32 %v99, %v130
    %v132 = vrot.slane %v87, %v131
    %v133 = vlaneseq
    %v134 = vshrl.u32 %v133, 7
    %v135 = vsub.s32 %v104, %v134
    %v136 = vrot.slane %v89, %v135
    %v137 = vsel %vm109, %v136, %v132
    %vm138 = vcmask 1041409
    %v139 = vsel %vm138, %v119, %v110
    %vm140 = vcmask 1042434
    %v141 = vsel %vm140, %v128, %v139
    %vm142 = vcmask 1043459
    %v143 = vsel %vm142, %v137, %v141
    %vm145 = vcmask 125952
    %v146 = vsel %vm145, %v143, -inf
    %147 = vmax.xlane.f32.xlu0 %v146
    %v148 = vpop.xlane.xlu0 %147
    %v150 = vlaneseq
    %v151 = vshrl.u32 %v150, 7
    %v152 = vsub.s32 0, %v151
    %v153 = vrot.slane %v148, %v152
    %v154 = vlaneseq
    %v155 = vshrl.u32 %v154, 7
    %v156 = vsub.s32 1, %v155
    %v157 = vrot.slane %v148, %v156
    %v158 = vlaneseq
    %v159 = vshrl.u32 %v158, 7
    %v160 = vsub.s32 2, %v159
    %v161 = vrot.slane %v148, %v160
    %v162 = vlaneseq
    %v163 = vshrl.u32 %v162, 7
    %v164 = vsub.s32 3, %v163
    %v165 = vrot.slane %v148, %v164
    %v170 = vsub.f32 %v75, %v153
    %v171 = vsub.f32 %v77, %v153
    %v172 = vsub.f32 %v79, %v157
    %v173 = vsub.f32 %v81, %v157
    %v174 = vsub.f32 %v83, %v161
    %v175 = vsub.f32 %v85, %v161
    %v176 = vsub.f32 %v87, %v165
    %v177 = vsub.f32 %v89, %v165
    %v178 = vmul.f32 %v170, 1.442695
    %v179 = vpow.pop %v178
    %v180 = vmul.f32 %v171, 1.442695
    %v181 = vpow.pop %v180
    %v182 = vmul.f32 %v172, 1.442695
    %v183 = vpow.pop %v182
    %v184 = vmul.f32 %v173, 1.442695
    %v185 = vpow.pop %v184
    %v186 = vmul.f32 %v174, 1.442695
    %v187 = vpow.pop %v186
    %v188 = vmul.f32 %v175, 1.442695
    %v189 = vpow.pop %v188
    %v190 = vmul.f32 %v176, 1.442695
    %v191 = vpow.pop %v190
    %v192 = vmul.f32 %v177, 1.442695
    %v193 = vpow.pop %v192
    %202 = vset.pattern.permute.xlu0 0
    %203 = vperm.xlu0 %202, %v179
    %v204 = vpop.permute.xlu0 %203
    %205 = vset.pattern.permute.xlu0 0
    %206 = vperm.xlu0 %205, %v181
    %v207 = vpop.permute.xlu0 %206
    %208 = vset.pattern.permute.xlu0 0
    %209 = vperm.xlu0 %208, %v183
    %v210 = vpop.permute.xlu0 %209
    %211 = vset.pattern.permute.xlu0 0
    %212 = vperm.xlu0 %211, %v185
    %v213 = vpop.permute.xlu0 %212
    %214 = vset.pattern.permute.xlu0 0
    %215 = vperm.xlu0 %214, %v187
    %v216 = vpop.permute.xlu0 %215
    %217 = vset.pattern.permute.xlu0 0
    %218 = vperm.xlu0 %217, %v189
    %v219 = vpop.permute.xlu0 %218
    %220 = vset.pattern.permute.xlu0 0
    %221 = vperm.xlu0 %220, %v191
    %v222 = vpop.permute.xlu0 %221
    %223 = vset.pattern.permute.xlu0 0
    %224 = vperm.xlu0 %223, %v193
    %v225 = vpop.permute.xlu0 %224
    %v226 = vlaneseq
    %v227 = vshrl.u32 %v226, 7
    %v228 = vsub.s32 %v99, %v227
    %v229 = vrot.slane %v204, %v228
    %v230 = vlaneseq
    %v231 = vshrl.u32 %v230, 7
    %v232 = vsub.s32 %v104, %v231
    %v233 = vrot.slane %v207, %v232
    %v234 = vsel %vm109, %v233, %v229
    %v235 = vlaneseq
    %v236 = vshrl.u32 %v235, 7
    %v237 = vsub.s32 %v99, %v236
    %v238 = vrot.slane %v210, %v237
    %v239 = vlaneseq
    %v240 = vshrl.u32 %v239, 7
    %v241 = vsub.s32 %v104, %v240
    %v242 = vrot.slane %v213, %v241
    %v243 = vsel %vm109, %v242, %v238
    %v244 = vlaneseq
    %v245 = vshrl.u32 %v244, 7
    %v246 = vsub.s32 %v99, %v245
    %v247 = vrot.slane %v216, %v246
    %v248 = vlaneseq
    %v249 = vshrl.u32 %v248, 7
    %v250 = vsub.s32 %v104, %v249
    %v251 = vrot.slane %v219, %v250
    %v252 = vsel %vm109, %v251, %v247
    %v253 = vlaneseq
    %v254 = vshrl.u32 %v253, 7
    %v255 = vsub.s32 %v99, %v254
    %v256 = vrot.slane %v222, %v255
    %v257 = vlaneseq
    %v258 = vshrl.u32 %v257, 7
    %v259 = vsub.s32 %v104, %v258
    %v260 = vrot.slane %v225, %v259
    %v261 = vsel %vm109, %v260, %v256
    %v262 = vsel %vm138, %v243, %v234
    %v263 = vsel %vm140, %v252, %v262
    %v264 = vsel %vm142, %v261, %v263
    %v266 = vsel %vm145, %v264, 0.0
    %267 = vadd.xlane.f32.xlu0 %v266
    %v268 = vpop.xlane.xlu0 %267
    %v269 = vrcp.pop %v268
    %v271 = vlaneseq
    %v272 = vshrl.u32 %v271, 7
    %v273 = vsub.s32 0, %v272
    %v274 = vrot.slane %v269, %v273
    %v275 = vlaneseq
    %v276 = vshrl.u32 %v275, 7
    %v277 = vsub.s32 1, %v276
    %v278 = vrot.slane %v269, %v277
    %v279 = vlaneseq
    %v280 = vshrl.u32 %v279, 7
    %v281 = vsub.s32 2, %v280
    %v282 = vrot.slane %v269, %v281
    %v283 = vlaneseq
    %v284 = vshrl.u32 %v283, 7
    %v285 = vsub.s32 3, %v284
    %v286 = vrot.slane %v269, %v285
    %v291 = vmul.f32 %v179, %v274
    %v292 = vmul.f32 %v181, %v274
    %v293 = vmul.f32 %v183, %v278
    %v294 = vmul.f32 %v185, %v278
    %v295 = vmul.f32 %v187, %v282
    %v296 = vmul.f32 %v189, %v282
    %v297 = vmul.f32 %v191, %v286
    %v298 = vmul.f32 %v193, %v286
    %307 = vset.pattern.permute.xlu0 0
    %308 = vperm.xlu0 %307, %v291
    %v309 = vpop.permute.xlu0 %308
    %310 = vset.pattern.permute.xlu0 0
    %311 = vperm.xlu0 %310, %v292
    %v312 = vpop.permute.xlu0 %311
    %313 = vset.pattern.permute.xlu0 0
    %314 = vperm.xlu0 %313, %v293
    %v315 = vpop.permute.xlu0 %314
    %316 = vset.pattern.permute.xlu0 0
    %317 = vperm.xlu0 %316, %v294
    %v318 = vpop.permute.xlu0 %317
    %319 = vset.pattern.permute.xlu0 0
    %320 = vperm.xlu0 %319, %v295
    %v321 = vpop.permute.xlu0 %320
    %322 = vset.pattern.permute.xlu0 0
    %323 = vperm.xlu0 %322, %v296
    %v324 = vpop.permute.xlu0 %323
    %325 = vset.pattern.permute.xlu0 0
    %326 = vperm.xlu0 %325, %v297
    %v327 = vpop.permute.xlu0 %326
    %328 = vset.pattern.permute.xlu0 0
    %329 = vperm.xlu0 %328, %v298
    %v330 = vpop.permute.xlu0 %329
    %v331 = vlaneseq
    %v332 = vshrl.u32 %v331, 7
    %v333 = vsub.s32 %v99, %v332
    %v334 = vrot.slane %v309, %v333
    %v335 = vlaneseq
    %v336 = vshrl.u32 %v335, 7
    %v337 = vsub.s32 %v104, %v336
    %v338 = vrot.slane %v312, %v337
    %v339 = vsel %vm109, %v338, %v334
    %v340 = vlaneseq
    %v341 = vshrl.u32 %v340, 7
    %v342 = vsub.s32 %v99, %v341
    %v343 = vrot.slane %v315, %v342
    %v344 = vlaneseq
    %v345 = vshrl.u32 %v344, 7
    %v346 = vsub.s32 %v104, %v345
    %v347 = vrot.slane %v318, %v346
    %v348 = vsel %vm109, %v347, %v343
    %v349 = vlaneseq
    %v350 = vshrl.u32 %v349, 7
    %v351 = vsub.s32 %v99, %v350
    %v352 = vrot.slane %v321, %v351
    %v353 = vlaneseq
    %v354 = vshrl.u32 %v353, 7
    %v355 = vsub.s32 %v104, %v354
    %v356 = vrot.slane %v324, %v355
    %v357 = vsel %vm109, %v356, %v352
    %v358 = vlaneseq
    %v359 = vshrl.u32 %v358, 7
    %v360 = vsub.s32 %v99, %v359
    %v361 = vrot.slane %v327, %v360
    %v362 = vlaneseq
    %v363 = vshrl.u32 %v362, 7
    %v364 = vsub.s32 %v104, %v363
    %v365 = vrot.slane %v330, %v364
    %v366 = vsel %vm109, %v365, %v361
    %v367 = vsel %vm138, %v348, %v339
    %v368 = vsel %vm140, %v357, %v367
    %v369 = vsel %vm142, %v366, %v368
    %371 = vst.msk [vmem:[#allocation2] sm:$0xf] %vm145, %v369
    // Predicated region
    $region10: #{attn_forward.1} parent=1 // pred_check
      _
    $region11: #{attn_forward.1} parent=1 // pred_check_branch
      %373 = sbr.rel (0) target = $region13
    $region12: #{attn_forward.1} parent=1 // pred_region
      %s375 = ssub.s32 64, 64
      %376 = vsyncadd [#allocation3], %s375
      %s378 = sshll.u32 [#allocation2], 4
      %s379 = int_to_ptr.vmem [resolvable:$true] %s378
      %381 = dma.vmem_to_hbm [thread:$0]  %s379, 64, %s2, [#allocation3]
    $region13: #{attn_forward.1} parent=1 // pred_fallthru
      _
    // Predicated region
    $region14: #{attn_forward.1} parent=1 // pred_check
      _
    $region15: #{attn_forward.1} parent=1 // pred_check_branch
      %383 = sbr.rel (0) target = $region17
    $region16: #{attn_forward.1} parent=1 // pred_region
      %384 = dma.done [#allocation3], 64
    $region17: #{attn_forward.1} parent=1 // pred_fallthru
      _
    %385 = vsyncpa [#allocation3], 1

</llo_original>
